<compile_context>
chip_gen: v6e
topology: v6e:2x2x1
jax: 0.10.0
libtpu: 0.0.40
codegen_flags: <defaults>
</compile_context>

<pallas_src>
import functools

import jax
import jax.numpy as jnp
from jax import lax
from jax.experimental import pallas as pl
from jax.experimental.pallas import tpu as pltpu

_LANES = 128          # lane width of the streamed 2-D view (one vreg lane dim)
_DEF_CHUNK_ROWS = 32  # rows per inner-loop step: (32, 128) f32 = 16 KiB / input

# Reduction bookkeeping of the composed module (metadata only; mirrors
# ComposeObjective.__init__ / get_unique_reduction).
COMPOSE_REDUCTION = {"mse": "mean", "l1": "mean", None: "mean"}


def _vmem_capacity_bytes():
    """Physical VMEM of the local TPU; conservative (v7x-sized) fallback."""
    try:
        return int(pltpu.get_tpu_info().vmem_capacity_bytes)
    except Exception:
        return 64 << 20


def _compose_loss_kernel(pred_ref, tgt_ref, acc_ref, *, chunk_rows):
    """Fused partial-sum kernel for the composed {'mse', 'l1'} objectives.

    Grid: (num_blocks,) over the row axis ("arbitrary" reduction axis).  The
    output block is the same for every step, so it is a VMEM-resident
    accumulator: zero-initialized at step 0 and written back to HBM once.

    pred_ref / tgt_ref : (rows_per_block, 128) block of the flattened inputs.
    acc_ref            : (2, chunk_rows, 128) accumulator;
                         acc_ref[0] = partial sum(d*d), acc_ref[1] = sum(|d|).
    """
    step = pl.program_id(0)

    @pl.when(step == 0)
    def _():
        acc_ref[...] = jnp.zeros_like(acc_ref)

    n_chunks = pred_ref.shape[0] // chunk_rows  # static

    def body(c, carry):
        sq, ab = carry
        r0 = pl.multiple_of(c * chunk_rows, chunk_rows)
        p = pred_ref[pl.ds(r0, chunk_rows), :].astype(jnp.float32)
        t = tgt_ref[pl.ds(r0, chunk_rows), :].astype(jnp.float32)
        d = p - t
        return sq + d * d, ab + jnp.abs(d)

    zero = jnp.zeros((chunk_rows, _LANES), jnp.float32)
    # Running sums live in vregs across the loop; only two (chunk,128) adds
    # into the VMEM accumulator per grid step.
    sq, ab = lax.fori_loop(0, n_chunks, body, (zero, zero), unroll=2)
    acc_ref[0] += sq
    acc_ref[1] += ab


def _fused_partial_sums(pred_flat, tgt_flat):
    """One streaming pass over the data -> (sum(d^2), sum(|d|)) f32 scalars."""
    n = pred_flat.shape[0]
    itemsize = jnp.dtype(pred_flat.dtype).itemsize
    row_bytes = _LANES * itemsize
    rows_total = n // _LANES

    # Minimum sublane tiling for this dtype (f32: 8, bf16: 16, int8/fp8: 32).
    min_rows = max(8, 32 // itemsize)
    chunk_rows = _DEF_CHUNK_ROWS if rows_total >= _DEF_CHUNK_ROWS else min_rows

    sq = jnp.float32(0.0)
    ab = jnp.float32(0.0)
    rem_start = 0

    if rows_total >= chunk_rows:
        # ---- generation-aware block sizing --------------------------------
        vmem_cap = _vmem_capacity_bytes()
        block_bytes = (8 << 20) if vmem_cap >= (96 << 20) else (4 << 20)
        # 2 inputs x 2 pipeline buffers + margin, explicit so scoped defaults
        # (16 MiB v5e / 32 MiB v6e,v7x) never gate the bigger tiles.
        vmem_limit = int(min(vmem_cap - (8 << 20), 4 * block_bytes + (8 << 20)))

        rows_cap = max(chunk_rows, block_bytes // row_bytes)
        num_blocks = pl.cdiv(rows_total, rows_cap)
        rows_per_block = (rows_total // num_blocks) // chunk_rows * chunk_rows
        rows_kernel = num_blocks * rows_per_block
        rem_start = rows_kernel * _LANES

        if n % _LANES == 0:
            # Free re-view (bitcast) — no HBM copy.  The grid simply does not
            # visit rows beyond rows_kernel; those go to the JAX remainder.
            pred2d = pred_flat.reshape(rows_total, _LANES)
            tgt2d = tgt_flat.reshape(rows_total, _LANES)
        else:
            # TODO(synk): n % 128 != 0 cannot be re-viewed lane-dense without a
            # prefix-slice copy; XLA materializes this slice.
            m = rows_total * _LANES
            pred2d = lax.slice(pred_flat, (0,), (m,)).reshape(rows_total, _LANES)
            tgt2d = lax.slice(tgt_flat, (0,), (m,)).reshape(rows_total, _LANES)

        kernel = functools.partial(_compose_loss_kernel, chunk_rows=chunk_rows)
        # TODO(synk): on v7x (2 TensorCores) add a leading CORE_PARALLEL split
        # axis with one partial slab per core to use both cores' HBM bandwidth.
        partials = pl.pallas_call(
            kernel,
            out_shape=jax.ShapeDtypeStruct((2, chunk_rows, _LANES), jnp.float32),
            grid_spec=pltpu.PrefetchScalarGridSpec(
                num_scalar_prefetch=0,
                grid=(num_blocks,),
                in_specs=[
                    pl.BlockSpec((rows_per_block, _LANES), lambda i: (i, 0)),
                    pl.BlockSpec((rows_per_block, _LANES), lambda i: (i, 0)),
                ],
                out_specs=pl.BlockSpec(
                    (2, chunk_rows, _LANES), lambda i: (0, 0, 0)),
            ),
            compiler_params=pltpu.CompilerParams(
                dimension_semantics=("arbitrary",),
                vmem_limit_bytes=vmem_limit,
            ),
        )(pred2d, tgt2d)

        sq = jnp.sum(partials[0])   # single cross-lane reduce on tiny partials
        ab = jnp.sum(partials[1])

    if rem_start < n:
        # Leftover rows not covered by whole blocks + sub-128 tail (and the
        # whole input when it is smaller than one minimal tile): tiny, plain JAX.
        dr = (pred_flat[rem_start:].astype(jnp.float32)
              - tgt_flat[rem_start:].astype(jnp.float32))
        sq = sq + jnp.sum(dr * dr)
        ab = ab + jnp.sum(jnp.abs(dr))

    return sq, ab


@jax.jit
def _compose_objective_losses(outputs, targets):
    """Returns (mse, l1, total) as f32 scalars (tuple -> jit-safe pytree)."""
    n = outputs.size  # static at trace time
    sq, ab = _fused_partial_sums(outputs.reshape(-1), targets.reshape(-1))
    mse = sq / jnp.float32(n)    # reduction='mean'
    l1 = ab / jnp.float32(n)     # reduction='mean'
    # ComposeObjective.forward: loss = zeros_like(first_loss); loss += each child.
    total = jnp.zeros_like(mse) + mse + l1
    return mse, l1, total


def compose_objective_forward(outputs, targets):
    """JAX/Pallas equivalent of ComposeObjective({'mse': MSE(), 'l1': L1()}).forward.

    Returns {'mse': scalar, 'l1': scalar, None: scalar sum}.  The dict (mixed
    str/None keys -> not a sortable JAX pytree) is assembled outside jit.
    """
    mse, l1, total = _compose_objective_losses(outputs, targets)
    return {"mse": mse, "l1": l1, None: total}


def _check(outputs, targets):
    results = compose_objective_forward(outputs, targets)
    jax.block_until_ready(results[None])
    d = (outputs - targets).astype(jnp.float32)
    ref_mse = jnp.mean(d * d)
    ref_l1 = jnp.mean(jnp.abs(d))
    assert jnp.allclose(results["mse"], ref_mse, rtol=1e-5, atol=1e-6)
    assert jnp.allclose(results["l1"], ref_l1, rtol=1e-5, atol=1e-6)
    assert jnp.allclose(results[None], ref_mse + ref_l1, rtol=1e-5, atol=1e-6)


if __name__ == "__main__":
    key = jax.random.PRNGKey(0)
    k1, k2, k3, k4 = jax.random.split(key, 4)

    # Small NCHW shapes consistent with a vision objective: (N=2, C=4, H=16, W=16).
    # n = 2048 is 128-aligned -> zero-copy kernel path, no remainder.
    outputs = jax.random.normal(k1, (2, 4, 16, 16), dtype=jnp.float32)
    targets = jax.random.normal(k2, (2, 4, 16, 16), dtype=jnp.float32)
    _check(outputs, targets)

    # A misaligned shape to exercise the remainder/fallback path as well.
    outputs2 = jax.random.normal(k3, (3, 5, 17, 19), dtype=jnp.float32)
    targets2 = jax.random.normal(k4, (3, 5, 17, 19), dtype=jnp.float32)
    _check(outputs2, targets2)

    print("KERNEL_OK")
</pallas_src>

<mosaic_0001>
module attributes {stable_mosaic.version = 11 : i64} {
  func.func @_compose_loss_kernel(%arg0: i32, %arg1: memref<16x128xf32, #tpu.memory_space<vmem>>, %arg2: memref<16x128xf32, #tpu.memory_space<vmem>>, %arg3: memref<2x8x128xf32, #tpu.memory_space<vmem>>) attributes {dimension_semantics = [#tpu.dimension_semantics<arbitrary>], iteration_bounds = array<i64: 1>, scalar_prefetch = 0 : i64, scratch_operands = 0 : i64, tpu.core_type = #tpu.core_type<tc>, window_params = [{transform_indices = @transform_0, window_bounds = array<i64: 16, 128>}, {transform_indices = @transform_1, window_bounds = array<i64: 16, 128>}, {pipeline_mode = #tpu.pipeline_mode<synchronous>, transform_indices = @transform_2, window_bounds = array<i64: 2, 8, 128>}]} {
    %c0_i32 = arith.constant 0 : i32
    %0 = arith.cmpi eq, %arg0, %c0_i32 : i32
    %1 = arith.extui %0 : i1 to i32
    %c0_i32_0 = arith.constant 0 : i32
    %2 = arith.cmpi ne, %1, %c0_i32_0 : i32
    scf.if %2 {
      %cst_17 = arith.constant 0.000000e+00 : f32
      %38 = vector.broadcast %cst_17 : f32 to vector<2x8x128xf32>
      %c0_18 = arith.constant 0 : index
      %c0_19 = arith.constant 0 : index
      %c0_20 = arith.constant 0 : index
      %39 = vector.load %arg3[%c0_18, %c0_19, %c0_20] : memref<2x8x128xf32, #tpu.memory_space<vmem>>, vector<2x8x128xf32>
      tpu.vector_store %arg3[%c0_18, %c0_19, %c0_20], %38 {strides = array<i32>} : memref<2x8x128xf32, #tpu.memory_space<vmem>>, vector<2x8x128xf32>,
    } else {
    }
    %cst = arith.constant 0.000000e+00 : f32
    %3 = vector.broadcast %cst : f32 to vector<8x128xf32>
    %c0_i32_1 = arith.constant 0 : i32
    %c8_i32 = arith.constant 8 : i32
    %4 = arith.muli %c0_i32_1, %c8_i32 : i32
    %5 = tpu.assume_multiple %4, 8 : i32
    %6 = arith.index_cast %5 : i32 to index
    %c0 = arith.constant 0 : index
    %7 = vector.load %arg1[%6, %c0] : memref<16x128xf32, #tpu.memory_space<vmem>>, vector<8x128xf32>
    %8 = arith.index_cast %5 : i32 to index
    %c0_2 = arith.constant 0 : index
    %9 = vector.load %arg2[%8, %c0_2] : memref<16x128xf32, #tpu.memory_space<vmem>>, vector<8x128xf32>
    %10 = arith.subf %7, %9 : vector<8x128xf32>
    %11 = arith.mulf %10, %10 : vector<8x128xf32>
    %12 = arith.addf %3, %11 : vector<8x128xf32>
    %13 = math.absf %10 : vector<8x128xf32>
    %14 = arith.addf %3, %13 : vector<8x128xf32>
    %c1_i32 = arith.constant 1 : i32
    %c8_i32_3 = arith.constant 8 : i32
    %15 = arith.muli %c1_i32, %c8_i32_3 : i32
    %16 = tpu.assume_multiple %15, 8 : i32
    %17 = arith.index_cast %16 : i32 to index
    %c0_4 = arith.constant 0 : index
    %18 = vector.load %arg1[%17, %c0_4] : memref<16x128xf32, #tpu.memory_space<vmem>>, vector<8x128xf32>
    %19 = arith.index_cast %16 : i32 to index
    %c0_5 = arith.constant 0 : index
    %20 = vector.load %arg2[%19, %c0_5] : memref<16x128xf32, #tpu.memory_space<vmem>>, vector<8x128xf32>
    %21 = arith.subf %18, %20 : vector<8x128xf32>
    %22 = arith.mulf %21, %21 : vector<8x128xf32>
    %23 = arith.addf %12, %22 : vector<8x128xf32>
    %24 = math.absf %21 : vector<8x128xf32>
    %25 = arith.addf %14, %24 : vector<8x128xf32>
    %c2_i32 = arith.constant 2 : i32
    %c0_6 = arith.constant 0 : index
    %c0_7 = arith.constant 0 : index
    %c0_8 = arith.constant 0 : index
    %26 = vector.load %arg3[%c0_6, %c0_7, %c0_8] : memref<2x8x128xf32, #tpu.memory_space<vmem>>, vector<1x8x128xf32>
    %27 = vector.shape_cast %26 : vector<1x8x128xf32> to vector<8x128xf32>
    %28 = arith.addf %27, %23 : vector<8x128xf32>
    %c0_9 = arith.constant 0 : index
    %c0_10 = arith.constant 0 : index
    %c0_11 = arith.constant 0 : index
    %29 = vector.load %arg3[%c0_9, %c0_10, %c0_11] : memref<2x8x128xf32, #tpu.memory_space<vmem>>, vector<1x8x128xf32>
    %30 = vector.shape_cast %29 : vector<1x8x128xf32> to vector<8x128xf32>
    %31 = vector.shape_cast %28 : vector<8x128xf32> to vector<1x8x128xf32>
    tpu.vector_store %arg3[%c0_9, %c0_10, %c0_11], %31 {strides = array<i32>} : memref<2x8x128xf32, #tpu.memory_space<vmem>>, vector<1x8x128xf32>,
    %c1 = arith.constant 1 : index
    %c0_12 = arith.constant 0 : index
    %c0_13 = arith.constant 0 : index
    %32 = vector.load %arg3[%c1, %c0_12, %c0_13] : memref<2x8x128xf32, #tpu.memory_space<vmem>>, vector<1x8x128xf32>
    %33 = vector.shape_cast %32 : vector<1x8x128xf32> to vector<8x128xf32>
    %34 = arith.addf %33, %25 : vector<8x128xf32>
    %c1_14 = arith.constant 1 : index
    %c0_15 = arith.constant 0 : index
    %c0_16 = arith.constant 0 : index
    %35 = vector.load %arg3[%c1_14, %c0_15, %c0_16] : memref<2x8x128xf32, #tpu.memory_space<vmem>>, vector<1x8x128xf32>
    %36 = vector.shape_cast %35 : vector<1x8x128xf32> to vector<8x128xf32>
    %37 = vector.shape_cast %34 : vector<8x128xf32> to vector<1x8x128xf32>
    tpu.vector_store %arg3[%c1_14, %c0_15, %c0_16], %37 {strides = array<i32>} : memref<2x8x128xf32, #tpu.memory_space<vmem>>, vector<1x8x128xf32>,
    return
  }
  func.func @transform_0(%arg0: i32) -> (i32, i32) {
    %c0_i32 = arith.constant 0 : i32
    %c0_i32_0 = arith.constant 0 : i32
    return %arg0, %c0_i32 : i32, i32
  }
  func.func @transform_1(%arg0: i32) -> (i32, i32) {
    %c0_i32 = arith.constant 0 : i32
    %c0_i32_0 = arith.constant 0 : i32
    return %arg0, %c0_i32 : i32, i32
  }
  func.func @transform_2(%arg0: i32) -> (i32, i32, i32) {
    %c0_i32 = arith.constant 0 : i32
    %c0_i32_0 = arith.constant 0 : i32
    %c0_i32_1 = arith.constant 0 : i32
    %c0_i32_2 = arith.constant 0 : i32
    return %c0_i32, %c0_i32_0, %c0_i32_1 : i32, i32, i32
  }
}

</mosaic_0001>

<llo_original>
// kernel: _compose_objective_losses.1
$region0: #{_compose_objective_losses.1}
  #allocation0 [shape = 'u32[]', space=smem, size = 0x4, offset = 0x4, fixed_abs, tag = 'smem constant byte address 0x4 - core index']
  #allocation1 [shape = 'u32[144,128]{1,0:T(1,128)}', space=vmem, size = 0x12000, scoped, tag = 'internal scratch']
  %s0 = inlined_call_operand.vmem [shape: f32[16,128], index: 0, kind: input, shape index: {}]
  %s1 = inlined_call_operand.vmem [shape: f32[16,128], index: 1, kind: input, shape index: {}]
  %s2 = inlined_call_operand.vmem [shape: f32[2,8,128], index: 2, kind: output, shape index: {}]
  %s3 = sld [smem:[#allocation0]]
  $region22: #{_compose_objective_losses.1} parent=0
    _
  %s5 = ssub.s32 1, %s3
  %s6 = scalar_select 0, %s5, %s3
  // Predicated region
  $region2: #{_compose_objective_losses.1} parent=0 // pred_check
    _
  $region3: #{_compose_objective_losses.1} parent=0 // pred_check_branch
    %8 = sbr.rel (0) target = $region5
  $region4: #{_compose_objective_losses.1} parent=0 // pred_region
    _
  $region5: #{_compose_objective_losses.1} parent=0 // pred_fallthru
    _
  // Predicated region
  $region6: #{_compose_objective_losses.1} parent=0 // pred_check
    _
  $region7: #{_compose_objective_losses.1} parent=0 // pred_check_branch
    %10 = sbr.rel (0) target = $region9
  $region8: #{_compose_objective_losses.1} parent=0 // pred_region
    _
  $region9: #{_compose_objective_losses.1} parent=0 // pred_fallthru
    _
  %p11 = scmp.eq.s32.totalorder 0, 0
  // Predicated region
  $region10: #{_compose_objective_losses.1} parent=0 // pred_check
    %p12 = pneg %p11
  $region11: #{_compose_objective_losses.1} parent=0 // pred_check_branch
    %14 = sbr.rel (%p12) target = $region13
  $region12: #{_compose_objective_losses.1} parent=0 // pred_region
    %15 = vst [vmem:[%s2] sm:$0xff] 0.0
    %16 = vst [vmem:[%s2 + $0x8] sm:$0xff] 0.0
  $region13: #{_compose_objective_losses.1} parent=0 // pred_fallthru
    _
  %v17 = vld [vmem:[%s0] sm:$0xff]
  %v18 = vld [vmem:[%s1] sm:$0xff]
  %v19 = vsub.f32 %v17, %v18
  %v20 = vmul.f32 %v19, %v19
  %v21 = vadd.f32 %v20, 0.0
  %v22 = vand.u32 2147483647, %v19
  %v23 = vadd.f32 %v22, 0.0
  %s24 = scalar_lea.vmem %s0, 8
  %v25 = vld [vmem:[%s24] sm:$0xff]
  %s26 = scalar_lea.vmem %s1, 8
  %v27 = vld [vmem:[%s26] sm:$0xff]
  %v28 = vsub.f32 %v25, %v27
  %v29 = vmul.f32 %v28, %v28
  %v30 = vadd.f32 %v21, %v29
  %v31 = vand.u32 2147483647, %v28
  %v32 = vadd.f32 %v23, %v31
  %v33 = vld [vmem:[%s2] sm:$0xff]
  %v34 = vadd.f32 %v33, %v30
  %35 = vst [vmem:[%s2] sm:$0xff] %v34
  %s36 = scalar_lea.vmem %s2, 8
  %v37 = vld [vmem:[%s36] sm:$0xff]
  %v38 = vadd.f32 %v37, %v32
  %39 = vst [vmem:[%s36] sm:$0xff] %v38
  // Predicated region
  $region14: #{_compose_objective_losses.1} parent=0 // pred_check
    _
  $region15: #{_compose_objective_losses.1} parent=0 // pred_check_branch
    %41 = sbr.rel (0) target = $region17
  $region16: #{_compose_objective_losses.1} parent=0 // pred_region
    _
  $region17: #{_compose_objective_losses.1} parent=0 // pred_fallthru
    _
  // Predicated region
  $region18: #{_compose_objective_losses.1} parent=0 // pred_check
    _
  $region19: #{_compose_objective_losses.1} parent=0 // pred_check_branch
    %43 = sbr.rel (0) target = $region21
  $region20: #{_compose_objective_losses.1} parent=0 // pred_region
    _
  $region21: #{_compose_objective_losses.1} parent=0 // pred_fallthru
    _

</llo_original>
